<compile_context>
chip_gen: v7x
topology: tpu7x:2x2x1
jax: 0.10.0
libtpu: 0.0.40
codegen_flags: <defaults>
</compile_context>

<pallas_src>
import math
import jax
import jax.numpy as jnp
from jax.experimental import pallas as pl
from jax.experimental.pallas import tpu as pltpu

HIDDEN = 6
INPUT_SIZE = 11      # winequality-red.csv has 12 columns -> 11 features
NUM_CLASSES = 1


def _regression_kernel(x_ref, w1b1_ref, w2b2_ref, o_ref):
    """One batch tile; batch is the lane axis.

    x_ref    : [INPUT_SIZE, TB]        VMEM   (lane-dense batch tile)
    w1b1_ref : [HIDDEN, INPUT_SIZE+1]  VMEM   (resident; last column = b1)
    w2b2_ref : [HIDDEN + 1]            SMEM   (w2[0..5], b2)
    o_ref    : [NUM_CLASSES, TB]       VMEM   (lane-dense output)
    """
    x = x_ref[...]                                    # [11, TB] f32
    w1b1 = w1b1_ref[...]                              # [6, 12]
    w1 = w1b1[:, :INPUT_SIZE]                         # [6, 11]
    b1 = w1b1[:, INPUT_SIZE:]                         # [6, 1]

    # Layer 1 on the MXU: N = TB is lane-dense, result stays [6, TB].
    h = jnp.dot(w1, x, preferred_element_type=jnp.float32) + b1

    # Sigmoid: exp on the EUP, approx reciprocal also on the EUP (otherwise
    # idle slot) instead of a VPU f32 divide.
    h = pl.reciprocal(1.0 + jnp.exp(-h), approx=True)  # [6, TB]

    # Layer 2 as 6 scalar-broadcast FMAs on the VPU. Batch is the lane axis so
    # no cross-lane reduction (and no MXU push/pop) is needed.
    acc = jnp.zeros((NUM_CLASSES, h.shape[1]), jnp.float32)
    for j in range(HIDDEN):
        acc = acc + w2b2_ref[j] * h[j:j + 1, :]
    acc = acc + w2b2_ref[HIDDEN]                       # + b2

    o_ref[...] = acc.astype(o_ref.dtype)


def regression_forward(x, w1, b1, w2, b2, *, tb=512):
    """Forward pass matching the PyTorch module.

    x : [B, INPUT_SIZE] f32 (PyTorch nn.Linear convention)
    w1: [HIDDEN, INPUT_SIZE]    b1: [HIDDEN]
    w2: [NUM_CLASSES, HIDDEN]   b2: [NUM_CLASSES]
    returns [B, NUM_CLASSES]
    """
    B = x.shape[0]
    dtype = x.dtype

    # Put batch on the lane axis (single XLA transpose outside the kernel).
    x_t = x.T                                          # [INPUT_SIZE, B]

    # Batch tile: multiple of 128 lanes; don't over-pad tiny demo batches.
    tb_eff = min(tb, ((B + 127) // 128) * 128)
    num_tiles = pl.cdiv(B, tb_eff)
    b_pad = num_tiles * tb_eff
    if b_pad != B:
        x_t = jnp.pad(x_t, ((0, 0), (0, b_pad - B)))

    # Collapse 4 parameter streams into 2: [w1 | b1] (VMEM), [w2, b2] (SMEM).
    w1b1 = jnp.concatenate(
        [w1, b1.reshape(HIDDEN, 1)], axis=1).astype(jnp.float32)       # [6, 12]
    w2b2 = jnp.concatenate(
        [w2.reshape(-1), b2.reshape(-1)]).astype(jnp.float32)          # [7]

    cost = pl.CostEstimate(
        flops=2 * B * HIDDEN * (INPUT_SIZE + 1),
        transcendentals=2 * B * HIDDEN,                # exp + approx reciprocal
        bytes_accessed=(B * (INPUT_SIZE + NUM_CLASSES)
                        + w1b1.size + w2b2.size) * 4,
    )

    out_t = pl.pallas_call(
        _regression_kernel,
        out_shape=jax.ShapeDtypeStruct((NUM_CLASSES, b_pad), dtype),
        grid=(num_tiles,),
        in_specs=[
            # Batch-tiled, lane-dense input.
            pl.BlockSpec((INPUT_SIZE, tb_eff), lambda i: (0, i)),
            # Weights: constant block index -> DMA'd once, VMEM-resident.
            pl.BlockSpec((HIDDEN, INPUT_SIZE + 1), lambda i: (0, 0)),
            # Second-layer weights + bias as SMEM scalars.
            pl.BlockSpec(memory_space=pltpu.MemorySpace.SMEM),
        ],
        out_specs=pl.BlockSpec((NUM_CLASSES, tb_eff), lambda i: (0, i)),
        compiler_params=pltpu.CompilerParams(
            dimension_semantics=("parallel",),         # shards over v7x's 2 TCs
        ),
        cost_estimate=cost,
    )(x_t, w1b1, w2b2)

    # TODO(synk): on v6e/v7x, feeding x as bf16 would halve HBM traffic; kept
    # f32 here to preserve the module's exact dtype semantics (and v5e VPU).
    return out_t[:, :B].T                              # [B, NUM_CLASSES]


def init_params(key):
    """Deterministic init mimicking nn.Linear's uniform(-1/sqrt(fan_in), ...)."""
    k1, k2, k3, k4 = jax.random.split(key, 4)
    bound1 = 1.0 / math.sqrt(INPUT_SIZE)
    bound2 = 1.0 / math.sqrt(HIDDEN)
    # PyTorch layout: weight is [out_features, in_features].
    w1 = jax.random.uniform(k1, (HIDDEN, INPUT_SIZE), jnp.float32,
                            minval=-bound1, maxval=bound1)
    b1 = jax.random.uniform(k2, (HIDDEN,), jnp.float32,
                            minval=-bound1, maxval=bound1)
    w2 = jax.random.uniform(k3, (NUM_CLASSES, HIDDEN), jnp.float32,
                            minval=-bound2, maxval=bound2)
    b2 = jax.random.uniform(k4, (NUM_CLASSES,), jnp.float32,
                            minval=-bound2, maxval=bound2)
    return w1, b1, w2, b2


if __name__ == "__main__":
    key = jax.random.PRNGKey(0)
    pkey, xkey = jax.random.split(key)

    # Small but non-trivial: 3 grid steps with TB=512 and a padded remainder.
    batch = 1027
    x = jax.random.normal(xkey, (batch, INPUT_SIZE), jnp.float32)
    w1, b1, w2, b2 = init_params(pkey)

    out = regression_forward(x, w1, b1, w2, b2)
    out = jax.block_until_ready(out)

    # Pure-JAX reference check (PyTorch semantics).
    ref = jax.nn.sigmoid(x @ w1.T + b1) @ w2.T + b2
    assert out.shape == (batch, NUM_CLASSES)
    # Tolerance loosened slightly because the sigmoid denominator uses the
    # EUP approximate reciprocal (pl.reciprocal(..., approx=True)).
    assert jnp.allclose(out, ref, atol=1e-2, rtol=1e-2), \
        float(jnp.max(jnp.abs(out - ref)))

    print("KERNEL_OK")
</pallas_src>

<mosaic_0001>
module attributes {stable_mosaic.version = 11 : i64} {
  func.func @_regression_kernel(%arg0: i32, %arg1: memref<11x512xf32, #tpu.memory_space<vmem>>, %arg2: memref<6x12xf32, #tpu.memory_space<vmem>>, %arg3: memref<7xf32, #tpu.memory_space<smem>>, %arg4: memref<1x512xf32, #tpu.memory_space<vmem>>) attributes {dimension_semantics = [#tpu.dimension_semantics<parallel>], iteration_bounds = array<i64: 3>, scalar_prefetch = 0 : i64, scratch_operands = 0 : i64, tpu.core_type = #tpu.core_type<tc>, window_params = [{transform_indices = @transform_0, window_bounds = array<i64: 11, 512>}, {pipeline_mode = #tpu.pipeline_mode<synchronous>, transform_indices = @transform_1, window_bounds = array<i64: 6, 12>}, {transform_indices = @transform_2, window_bounds = array<i64: 7>}, {transform_indices = @transform_3, window_bounds = array<i64: 1, 512>}]} {
    %c0 = arith.constant 0 : index
    %c0_0 = arith.constant 0 : index
    %0 = vector.load %arg1[%c0, %c0_0] : memref<11x512xf32, #tpu.memory_space<vmem>>, vector<11x512xf32>
    %c0_1 = arith.constant 0 : index
    %c0_2 = arith.constant 0 : index
    %1 = vector.load %arg2[%c0_1, %c0_2] : memref<6x12xf32, #tpu.memory_space<vmem>>, vector<6x12xf32>
    %2 = vector.extract_strided_slice %1 {offsets = [0, 0], sizes = [6, 11], strides = [1, 1]} : vector<6x12xf32> to vector<6x11xf32>
    %3 = vector.extract_strided_slice %1 {offsets = [0, 11], sizes = [6, 1], strides = [1, 1]} : vector<6x12xf32> to vector<6x1xf32>
    %cst = arith.constant dense<0.000000e+00> : vector<6x512xf32>
    %4 = tpu.matmul %2, %0, %cst {dimension_numbers = #tpu.dot_dimension_numbers<[1], [0], [0], [1], [0, 0, 1, 1], [], []>} : vector<6x11xf32>, vector<11x512xf32>, vector<6x512xf32> -> vector<6x512xf32>
    %5 = vector.broadcast %3 : vector<6x1xf32> to vector<6x512xf32>
    %6 = arith.addf %4, %5 : vector<6x512xf32>
    %cst_3 = arith.constant 0.000000e+00 : f32
    %7 = vector.broadcast %cst_3 : f32 to vector<6x512xf32>
    %8 = arith.subf %7, %6 : vector<6x512xf32>
    %9 = math.exp %8 : vector<6x512xf32>
    %cst_4 = arith.constant 1.000000e+00 : f32
    %10 = vector.broadcast %cst_4 : f32 to vector<6x512xf32>
    %11 = arith.addf %10, %9 : vector<6x512xf32>
    %12 = tpu.reciprocal %11 {approx = true} : vector<6x512xf32> -> vector<6x512xf32>
    %cst_5 = arith.constant 0.000000e+00 : f32
    %13 = vector.broadcast %cst_5 : f32 to vector<1x512xf32>
    %c0_6 = arith.constant 0 : index
    %14 = memref.load %arg3[%c0_6] : memref<7xf32, #tpu.memory_space<smem>>
    %15 = vector.extract_strided_slice %12 {offsets = [0, 0], sizes = [1, 512], strides = [1, 1]} : vector<6x512xf32> to vector<1x512xf32>
    %16 = vector.broadcast %14 : f32 to vector<1x512xf32>
    %17 = arith.mulf %16, %15 : vector<1x512xf32>
    %18 = arith.addf %13, %17 : vector<1x512xf32>
    %c1 = arith.constant 1 : index
    %19 = memref.load %arg3[%c1] : memref<7xf32, #tpu.memory_space<smem>>
    %20 = vector.extract_strided_slice %12 {offsets = [1, 0], sizes = [1, 512], strides = [1, 1]} : vector<6x512xf32> to vector<1x512xf32>
    %21 = vector.broadcast %19 : f32 to vector<1x512xf32>
    %22 = arith.mulf %21, %20 : vector<1x512xf32>
    %23 = arith.addf %18, %22 : vector<1x512xf32>
    %c2 = arith.constant 2 : index
    %24 = memref.load %arg3[%c2] : memref<7xf32, #tpu.memory_space<smem>>
    %25 = vector.extract_strided_slice %12 {offsets = [2, 0], sizes = [1, 512], strides = [1, 1]} : vector<6x512xf32> to vector<1x512xf32>
    %26 = vector.broadcast %24 : f32 to vector<1x512xf32>
    %27 = arith.mulf %26, %25 : vector<1x512xf32>
    %28 = arith.addf %23, %27 : vector<1x512xf32>
    %c3 = arith.constant 3 : index
    %29 = memref.load %arg3[%c3] : memref<7xf32, #tpu.memory_space<smem>>
    %30 = vector.extract_strided_slice %12 {offsets = [3, 0], sizes = [1, 512], strides = [1, 1]} : vector<6x512xf32> to vector<1x512xf32>
    %31 = vector.broadcast %29 : f32 to vector<1x512xf32>
    %32 = arith.mulf %31, %30 : vector<1x512xf32>
    %33 = arith.addf %28, %32 : vector<1x512xf32>
    %c4 = arith.constant 4 : index
    %34 = memref.load %arg3[%c4] : memref<7xf32, #tpu.memory_space<smem>>
    %35 = vector.extract_strided_slice %12 {offsets = [4, 0], sizes = [1, 512], strides = [1, 1]} : vector<6x512xf32> to vector<1x512xf32>
    %36 = vector.broadcast %34 : f32 to vector<1x512xf32>
    %37 = arith.mulf %36, %35 : vector<1x512xf32>
    %38 = arith.addf %33, %37 : vector<1x512xf32>
    %c5 = arith.constant 5 : index
    %39 = memref.load %arg3[%c5] : memref<7xf32, #tpu.memory_space<smem>>
    %40 = vector.extract_strided_slice %12 {offsets = [5, 0], sizes = [1, 512], strides = [1, 1]} : vector<6x512xf32> to vector<1x512xf32>
    %41 = vector.broadcast %39 : f32 to vector<1x512xf32>
    %42 = arith.mulf %41, %40 : vector<1x512xf32>
    %43 = arith.addf %38, %42 : vector<1x512xf32>
    %c6 = arith.constant 6 : index
    %44 = memref.load %arg3[%c6] : memref<7xf32, #tpu.memory_space<smem>>
    %45 = vector.broadcast %44 : f32 to vector<1x512xf32>
    %46 = arith.addf %43, %45 : vector<1x512xf32>
    %c0_7 = arith.constant 0 : index
    %c0_8 = arith.constant 0 : index
    %47 = vector.load %arg4[%c0_7, %c0_8] : memref<1x512xf32, #tpu.memory_space<vmem>>, vector<1x512xf32>
    tpu.vector_store %arg4[%c0_7, %c0_8], %46 {strides = array<i32>} : memref<1x512xf32, #tpu.memory_space<vmem>>, vector<1x512xf32>,
    return
  }
  func.func @transform_0(%arg0: i32) -> (i32, i32) {
    %c0_i32 = arith.constant 0 : i32
    %c0_i32_0 = arith.constant 0 : i32
    return %c0_i32, %arg0 : i32, i32
  }
  func.func @transform_1(%arg0: i32) -> (i32, i32) {
    %c0_i32 = arith.constant 0 : i32
    %c0_i32_0 = arith.constant 0 : i32
    %c0_i32_1 = arith.constant 0 : i32
    return %c0_i32, %c0_i32_0 : i32, i32
  }
  func.func @transform_2(%arg0: i32) -> i32 {
    %c0_i32 = arith.constant 0 : i32
    %c0_i32_0 = arith.constant 0 : i32
    return %c0_i32 : i32
  }
  func.func @transform_3(%arg0: i32) -> (i32, i32) {
    %c0_i32 = arith.constant 0 : i32
    %c0_i32_0 = arith.constant 0 : i32
    return %c0_i32, %arg0 : i32, i32
  }
}

</mosaic_0001>

<llo_original>
// kernel: tpu_custom_call.1
$region0: #{tpu_custom_call.1}
  #allocation0 [shape = 'u32[]', space=smem, size = 0x4, offset = 0x4, fixed_abs, tag = 'smem constant byte address 0x4 - core index']
  #allocation1 [shape = 'u32[144,128]{1,0:T(1,128)}', space=vmem, size = 0x12000, scoped, tag = 'internal scratch']
  %s0 = inlined_call_operand.hbm [shape: f32[11,1536], index: 0, kind: input, shape index: {}]
  %s1 = inlined_call_operand.hbm [shape: f32[6,12], index: 1, kind: input, shape index: {}]
  %s2 = inlined_call_operand.vmem [shape: f32[7], index: 2, kind: input, shape index: {}]
  %s3 = inlined_call_operand.hbm [shape: f32[1,1536], index: 3, kind: output, shape index: {}]
  %s4 = sld [smem:[#allocation0]]
  $region57: #{tpu_custom_call.1} parent=0
    _
  %s6 = ssub.s32 1, %s4
  %s7 = scalar_select 0, %s6, %s4
  $region1: #{tpu_custom_call.1} parent=0
    #allocation2 [shape = 'u8[65536]{0}', space=vmem, size = 0x10000, scoped, tag = 'input window, operand 0']
    #allocation3 [shape = 's32[2]{0}', space=sflag, size = 0x8, scoped, tag = 'scoped memory for tpu_custom_call.1']
    #allocation4 [shape = 's32[2]{0}', space=sflag, size = 0x8, scoped, tag = 'scoped memory for tpu_custom_call.1']
    #allocation5 [shape = 's32[2]{0}', space=sflag, size = 0x8, scoped, tag = 'scoped memory for tpu_custom_call.1']
    #allocation6 [shape = 'u8[4096]{0}', space=vmem, size = 0x1000, scoped, tag = 'input window, operand 1, single buffered']
    #allocation7 [shape = 's32[1]{0}', space=sflag, size = 0x4, scoped, tag = 'scoped memory for tpu_custom_call.1']
    #allocation8 [shape = 'u8[512]{0}', space=smem, size = 0x200, scoped, tag = 'input window, operand 2, single buffered']
    #allocation9 [shape = 'u8[4096]{0}', space=vmem, size = 0x1000, scoped, tag = 'output window, operand 0']
    %8 = vsyncpa [#allocation3], 0
    %s9 = scalar_lea.sflag [#allocation3], 1
    %10 = vsyncpa %s9, 0
    %11 = vsyncpa [#allocation7], 0
    %12 = vsyncpa [#allocation5], 0
    %13 = vsyncpa [#allocation4], 0
    %s14 = scalar_lea.sflag [#allocation4], 1
    %15 = vsyncpa %s14, 0
    loop: start=0, step=1, limit=5
    $region2: #{tpu_custom_call.1} parent=1 // loop_pre_header
      _
    $region3: #{tpu_custom_call.1} parent=1 // loop_header
      %s17 = sphi 0, %s21
      %p18 = scmp.ge.s32.totalorder %s17, 5
      %s27 = sphi 0, %s29
      %s30 = sphi 0, %s27
      %s31 = sphi 0, %s30
      %s47 = sphi 0, %s31
      %s51 = sphi 0, %s51
      %s53 = sphi 0, %s51
      %s54 = sphi 0, %s53
      %s68 = sphi 0, %s54
      %s72 = sphi 0, %s72
      %s74 = sphi 0, %s72
      %s75 = sphi 0, %s74
      %s89 = sphi 0, %s75
      %s95 = sphi 0, %s97
      %s98 = sphi 0, %s95
      %s99 = sphi 0, %s98
      %s115 = sphi 0, %s99
    $region4: #{tpu_custom_call.1} parent=1 // loop_header_branch
      %20 = sbr.rel (%p18) target = $region8
    $region5: #{tpu_custom_call.1} parent=1 // loop_body
      %s22 = ssub.s32 %s17, 1
      %s23 = ssub.s32 %s17, 2
      %s24 = sadd.s32 %s17, 1
      %s25 = ssub.s32 %s17, %s24
      %p26 = scmp.eq.s32.totalorder %s25, 0
      %s28 = sadd.s32 %s27, 1
      %s29 = scalar_select %p26, %s27, %s28
      %p32 = pneg %p26
      %p33 = scmp.eq.s32.totalorder %s17, 2
      %p34 = por %p32, %p33
      %p35 = scmp.ne.s32.totalorder %s27, %s30
      %p36 = scmp.eq.s32.totalorder %s17, 0
      %p37 = por %p35, %p36
      %p38 = scmp.ne.s32.totalorder %s27, %s30
      %p39 = scmp.eq.s32.totalorder %s22, 2
      %p40 = por %p38, %p39
      %p41 = scmp.ne.s32.totalorder %s30, %s31
      %p42 = scmp.eq.s32.totalorder %s22, 0
      %p43 = por %p41, %p42
      %p44 = scmp.ne.s32.totalorder %s30, %s31
      %p45 = scmp.eq.s32.totalorder %s23, 2
      %p46 = por %p44, %p45
      %p48 = scmp.ne.s32.totalorder %s31, %s47
      %p49 = scmp.eq.s32.totalorder %s23, 0
      %p50 = por %p48, %p49
      %s52 = sadd.s32 %s51, 1
      %p55 = scmp.eq.s32.totalorder %s17, 2
      %p56 = scmp.ne.s32.totalorder %s51, %s53
      %p57 = scmp.eq.s32.totalorder %s17, 0
      %p58 = por %p56, %p57
      %p59 = scmp.ne.s32.totalorder %s51, %s53
      %p60 = scmp.eq.s32.totalorder %s22, 2
      %p61 = por %p59, %p60
      %p62 = scmp.ne.s32.totalorder %s53, %s54
      %p63 = scmp.eq.s32.totalorder %s22, 0
      %p64 = por %p62, %p63
      %p65 = scmp.ne.s32.totalorder %s53, %s54
      %p66 = scmp.eq.s32.totalorder %s23, 2
      %p67 = por %p65, %p66
      %p69 = scmp.ne.s32.totalorder %s54, %s68
      %p70 = scmp.eq.s32.totalorder %s23, 0
      %p71 = por %p69, %p70
      %s73 = sadd.s32 %s72, 1
      %p76 = scmp.eq.s32.totalorder %s17, 2
      %p77 = scmp.ne.s32.totalorder %s72, %s74
      %p78 = scmp.eq.s32.totalorder %s17, 0
      %p79 = por %p77, %p78
      %p80 = scmp.ne.s32.totalorder %s72, %s74
      %p81 = scmp.eq.s32.totalorder %s22, 2
      %p82 = por %p80, %p81
      %p83 = scmp.ne.s32.totalorder %s74, %s75
      %p84 = scmp.eq.s32.totalorder %s22, 0
      %p85 = por %p83, %p84
      %p86 = scmp.ne.s32.totalorder %s74, %s75
      %p87 = scmp.eq.s32.totalorder %s23, 2
      %p88 = por %p86, %p87
      %p90 = scmp.ne.s32.totalorder %s75, %s89
      %p91 = scmp.eq.s32.totalorder %s23, 0
      %p92 = por %p90, %p91
      %s93 = ssub.s32 %s17, %s24
      %p94 = scmp.eq.s32.totalorder %s93, 0
      %s96 = sadd.s32 %s95, 1
      %s97 = scalar_select %p94, %s95, %s96
      %p100 = pneg %p94
      %p101 = scmp.eq.s32.totalorder %s17, 2
      %p102 = por %p100, %p101
      %p103 = scmp.ne.s32.totalorder %s95, %s98
      %p104 = scmp.eq.s32.totalorder %s17, 0
      %p105 = por %p103, %p104
      %p106 = scmp.ne.s32.totalorder %s95, %s98
      %p107 = scmp.eq.s32.totalorder %s22, 2
      %p108 = por %p106, %p107
      %p109 = scmp.ne.s32.totalorder %s98, %s99
      %p110 = scmp.eq.s32.totalorder %s22, 0
      %p111 = por %p109, %p110
      %p112 = scmp.ne.s32.totalorder %s98, %s99
      %p113 = scmp.eq.s32.totalorder %s23, 2
      %p114 = por %p112, %p113
      %p116 = scmp.ne.s32.totalorder %s99, %s115
      %p117 = scmp.eq.s32.totalorder %s23, 0
      %p118 = por %p116, %p117
      %p119 = scmp.le.s32.totalorder 1, %s17
      %p120 = scmp.lt.s32.totalorder %s17, 4
      %p121 = pnand %p119, %p120
      %p122 = pneg %p121
      // Predicated region
      $region9: #{tpu_custom_call.1} parent=5 // pred_check
        _
      $region10: #{tpu_custom_call.1} parent=5 // pred_check_branch
        %124 = sbr.rel (%p121) target = $region12
      $region11: #{tpu_custom_call.1} parent=5 // pred_region
        %s125 = ssub.s32 %s17, 1
        // Predicated region
        $region13: #{tpu_custom_call.1} parent=11 // pred_check
          %p126 = pneg %p64
        $region14: #{tpu_custom_call.1} parent=11 // pred_check_branch
          %128 = sbr.rel (%p126) target = $region16
        $region15: #{tpu_custom_call.1} parent=11 // pred_region
          %s130 = ssub.s32 128, 128
          %131 = vsyncadd [#allocation7], %s130
          %s133 = sshll.u32 [#allocation6], 4
          %s134 = int_to_ptr.vmem [resolvable:$true] %s133
          %136 = dma.hbm_to_vmem [thread:$0]  %s1, 128, %s134, [#allocation7]
        $region16: #{tpu_custom_call.1} parent=11 // pred_fallthru
          _
        // Predicated region
        $region17: #{tpu_custom_call.1} parent=11 // pred_check
          %p137 = pneg %p85
        $region18: #{tpu_custom_call.1} parent=11 // pred_check_branch
          %139 = sbr.rel (%p137) target = $region20
        $region19: #{tpu_custom_call.1} parent=11 // pred_region
          %s141 = ssub.s32 16, 16
          %142 = vsyncadd [#allocation5], %s141
          %s144 = sshll.u32 %s2, 4
          %s145 = int_to_ptr.vmem [resolvable:$true] %s144
          %147 = dma.vmem_to_smem %s145, 16, [#allocation8], [#allocation5]
        $region20: #{tpu_custom_call.1} parent=11 // pred_fallthru
          _
      $region12: #{tpu_custom_call.1} parent=5 // pred_fallthru
        _
      %p148 = scmp.lt.s32.totalorder %s17, 3
      // Predicated region
      $region21: #{tpu_custom_call.1} parent=5 // pred_check
        %p149 = pneg %p148
      $region22: #{tpu_custom_call.1} parent=5 // pred_check_branch
        %151 = sbr.rel (%p149) target = $region24
      $region23: #{tpu_custom_call.1} parent=5 // pred_region
        // Predicated region
        $region25: #{tpu_custom_call.1} parent=23 // pred_check
          %p152 = pneg %p37
        $region26: #{tpu_custom_call.1} parent=23 // pred_check_branch
          %154 = sbr.rel (%p152) target = $region28
        $region27: #{tpu_custom_call.1} parent=23 // pred_region
          %s155 = sand.u32 %s27, 1
          %s156 = scalar_lea.sflag [#allocation3], %s155
          %s157 = sand.u32 %s27, 1
          %s158 = smul.addr %s157, 64
          %s159 = scalar_lea.vmem [#allocation2], %s158
          %s160 = smul.u32 4, %s17
          %s162 = ssub.s32 1024, 1024
          %163 = vsyncadd %s156, %s162
          %s164 = smul.addr %s160, 128
          %s165 = scalar_lea.hbm %s0, %s164
          %s166 = sshll.u32 %s159, 4
          %s167 = int_to_ptr.vmem [resolvable:$true] %s166
          %172 = dma.hbm_to_vmem [thread:$0]  %s165, 1024, %s167, %s156, 1536, 512, 32
        $region28: #{tpu_custom_call.1} parent=23 // pred_fallthru
          _
      $region24: #{tpu_custom_call.1} parent=5 // pred_fallthru
        _
      %p173 = scmp.le.s32.totalorder 1, %s17
      %p174 = scmp.lt.s32.totalorder %s17, 4
      %p175 = pnand %p173, %p174
      %p176 = pneg %p175
      // Predicated region
      $region29: #{tpu_custom_call.1} parent=5 // pred_check
        _
      $region30: #{tpu_custom_call.1} parent=5 // pred_check_branch
        %178 = sbr.rel (%p175) target = $region32
      $region31: #{tpu_custom_call.1} parent=5 // pred_region
        %s179 = ssub.s32 %s17, 1
        %s180 = sand.u32 %s30, 1
        %s181 = scalar_lea.sflag [#allocation3], %s180
        %s182 = sand.u32 %s30, 1
        %s183 = smul.addr %s182, 64
        %s184 = scalar_lea.vmem [#allocation2], %s183
        // Predicated region
        $region33: #{tpu_custom_call.1} parent=31 // pred_check
          %p185 = pneg %p43
        $region34: #{tpu_custom_call.1} parent=31 // pred_check_branch
          %187 = sbr.rel (%p185) target = $region36
        $region35: #{tpu_custom_call.1} parent=31 // pred_region
          %188 = dma.done %s181, 1024
        $region36: #{tpu_custom_call.1} parent=31 // pred_fallthru
          _
        // Predicated region
        $region37: #{tpu_custom_call.1} parent=31 // pred_check
          %p189 = pneg %p64
        $region38: #{tpu_custom_call.1} parent=31 // pred_check_branch
          %191 = sbr.rel (%p189) target = $region40
        $region39: #{tpu_custom_call.1} parent=31 // pred_region
          %192 = dma.done [#allocation7], 128
        $region40: #{tpu_custom_call.1} parent=31 // pred_fallthru
          _
        // Predicated region
        $region41: #{tpu_custom_call.1} parent=31 // pred_check
          %p193 = pneg %p85
        $region42: #{tpu_custom_call.1} parent=31 // pred_check_branch
          %195 = sbr.rel (%p193) target = $region44
        $region43: #{tpu_custom_call.1} parent=31 // pred_region
          %196 = dma.done [#allocation5], 16
        $region44: #{tpu_custom_call.1} parent=31 // pred_fallthru
          _
        %197 = sfence
        %s198 = sand.u32 %s30, 1
        %s199 = scalar_lea.sflag [#allocation3], %s198
        %s200 = sand.u32 %s30, 1
        %s201 = smul.addr %s200, 64
        %s202 = scalar_lea.vmem [#allocation2], %s201
        %p203 = pneg %p43
        %p204 = pneg %p40
        %p205 = pneg %p64
        %p206 = pneg %p61
        %p207 = pneg %p85
        %p208 = pneg %p82
        %p209 = pneg %p111
        %p210 = pneg %p108
        %s211 = sand.u32 %s98, 1
        %s212 = scalar_lea.sflag [#allocation4], %s211
        %s213 = sand.u32 %s98, 1
        %s214 = smul.addr %s213, 4
        %s215 = scalar_lea.vmem [#allocation9], %s214
        %s216 = smul.u32 4, %s22
        %s217 = smul.u32 4, %s22
        %v218 = vld [vmem:[%s184] sm:$0xff]
        %v219 = vld [vmem:[%s184 + $0x8] sm:$0xff]
        %v220 = vld [vmem:[%s184 + $0x10] sm:$0xff]
        %v221 = vld [vmem:[%s184 + $0x18] sm:$0xff]
        %v222 = vld [vmem:[%s184 + $0x20] sm:$0x7]
        %v223 = vld [vmem:[%s184 + $0x28] sm:$0x7]
        %v224 = vld [vmem:[%s184 + $0x30] sm:$0x7]
        %v225 = vld [vmem:[%s184 + $0x38] sm:$0x7]
        %v226 = vld [vmem:[#allocation6] sm:$0x3f]
        %228 = vset.pattern.permute.xlu0 11
        %229 = vperm.xlu0 %228, %v226
        %v230 = vpop.permute.xlu0 %229
        %vm232 = vcmask 89088
        %v233 = vsel %vm232, %v226, 0
        %vm235 = vcmask 1042432
        %v237 = vsel %vm235, %v222, 0
        %v240 = vsel %vm235, %v223, 0
        %v243 = vsel %vm235, %v224, 0
        %v246 = vsel %vm235, %v225, 0
        %248 = vmatprep.subr.mxu0 %v219
        %249 = vmatpush1.msra.mxu0 %v218
        %250 = vmatprep.subr.mxu0 %v240
        %251 = vmatpush1.msra.mxu0 %v237
        %252 = vmatprep.subr.mxu0 0.0
        %253 = vmatpush1.msra.mxu0 0.0
        %254 = vmatprep.subr.mxu0 0.0
        %255 = vmatpush1.msra.mxu0 0.0
        %256 = vmatprep.subr.mxu0 0.0
        %257 = vmatpush1.msra.mxu0 0.0
        %258 = vmatprep.subr.mxu0 0.0
        %259 = vmatpush1.msra.mxu0 0.0
        %260 = vmatprep.subr.mxu0 0.0
        %261 = vmatpush1.msra.mxu0 0.0
        %262 = vmatprep.subr.mxu0 0.0
        %263 = vmatpush1.msra.mxu0 0.0
        %264 = vmatprep.subr.mxu0 0.0
        %265 = vmatpush1.msra.mxu0 0.0
        %266 = vmatprep.subr.mxu0 0.0
        %267 = vmatpush1.msra.mxu0 0.0
        %268 = vmatprep.subr.mxu0 0.0
        %269 = vmatpush1.msra.mxu0 0.0
        %270 = vmatprep.subr.mxu0 0.0
        %271 = vmatpush1.msra.mxu0 0.0
        %272 = vmatprep.subr.mxu0 0.0
        %273 = vmatpush1.msra.mxu0 0.0
        %274 = vmatprep.subr.mxu0 0.0
        %275 = vmatpush1.msra.mxu0 0.0
        %276 = vmatprep.subr.mxu0 0.0
        %277 = vmatpush1.msra.mxu0 0.0
        %278 = vmatprep.subr.mxu0 0.0
        %279 = vmatpush1.msra.mxu0 0.0
        %280 = vmatprep.subr.mxu0 0.0
        %281 = vmatpush1.msra.mxu0 0.0
        %282 = vmatprep.subr.mxu0 0.0
        %283 = vmatpush1.msra.mxu0 0.0
        %284 = vmatprep.subr.mxu0 0.0
        %285 = vmatpush1.msra.mxu0 0.0
        %286 = vmatprep.subr.mxu0 0.0
        %287 = vmatpush1.msra.mxu0 0.0
        %288 = vmatprep.subr.mxu0 0.0
        %289 = vmatpush1.msra.mxu0 0.0
        %290 = vmatprep.subr.mxu0 0.0
        %291 = vmatpush1.msra.mxu0 0.0
        %292 = vmatprep.subr.mxu0 0.0
        %293 = vmatpush1.msra.mxu0 0.0
        %294 = vmatprep.subr.mxu0 0.0
        %295 = vmatpush1.msra.mxu0 0.0
        %296 = vmatprep.subr.mxu0 0.0
        %297 = vmatpush1.msra.mxu0 0.0
        %298 = vmatprep.subr.mxu0 0.0
        %299 = vmatpush1.msra.mxu0 0.0
        %300 = vmatprep.subr.mxu0 0.0
        %301 = vmatpush1.msra.mxu0 0.0
        %302 = vmatprep.subr.mxu0 0.0
        %303 = vmatpush1.msra.mxu0 0.0
        %304 = vmatprep.subr.mxu0 0.0
        %305 = vmatpush1.msra.mxu0 0.0
        %306 = vmatprep.subr.mxu0 0.0
        %307 = vmatpush1.msra.mxu0 0.0
        %308 = vmatprep.subr.mxu0 0.0
        %309 = vmatpush1.msra.mxu0 0.0
        %310 = vmatprep.subr.mxu0 0.0
        %311 = vmatpush1.msra.mxu0 0.0
        %312 = vmatprep.mubr.f32.mxu0 0.0
        %313 = vmatmul.mubr.f32.gmra.mrb[0].mxu0 %v233
        %v314 = vpop.f32.mrb[0].mxu0
        %v315 = vadd.f32 %v230, %v314
        %v316 = vpop.f32.mrb[0].mxu0
        %v317 = vadd.f32 %v230, %v316
        %318 = vdwg.mxu0
        %319 = vmatprep.subr.mxu0 %v221
        %320 = vmatpush1.msra.mxu0 %v220
        %321 = vmatprep.subr.mxu0 %v246
        %322 = vmatpush1.msra.mxu0 %v243
        %323 = vmatprep.subr.mxu0 0.0
        %324 = vmatpush1.msra.mxu0 0.0
        %325 = vmatprep.subr.mxu0 0.0
        %326 = vmatpush1.msra.mxu0 0.0
        %327 = vmatprep.subr.mxu0 0.0
        %328 = vmatpush1.msra.mxu0 0.0
        %329 = vmatprep.subr.mxu0 0.0
        %330 = vmatpush1.msra.mxu0 0.0
        %331 = vmatprep.subr.mxu0 0.0
        %332 = vmatpush1.msra.mxu0 0.0
        %333 = vmatprep.subr.mxu0 0.0
        %334 = vmatpush1.msra.mxu0 0.0
        %335 = vmatprep.subr.mxu0 0.0
        %336 = vmatpush1.msra.mxu0 0.0
        %337 = vmatprep.subr.mxu0 0.0
        %338 = vmatpush1.msra.mxu0 0.0
        %339 = vmatprep.subr.mxu0 0.0
        %340 = vmatpush1.msra.mxu0 0.0
        %341 = vmatprep.subr.mxu0 0.0
        %342 = vmatpush1.msra.mxu0 0.0
        %343 = vmatprep.subr.mxu0 0.0
        %344 = vmatpush1.msra.mxu0 0.0
        %345 = vmatprep.subr.mxu0 0.0
        %346 = vmatpush1.msra.mxu0 0.0
        %347 = vmatprep.subr.mxu0 0.0
        %348 = vmatpush1.msra.mxu0 0.0
        %349 = vmatprep.subr.mxu0 0.0
        %350 = vmatpush1.msra.mxu0 0.0
        %351 = vmatprep.subr.mxu0 0.0
        %352 = vmatpush1.msra.mxu0 0.0
        %353 = vmatprep.subr.mxu0 0.0
        %354 = vmatpush1.msra.mxu0 0.0
        %355 = vmatprep.subr.mxu0 0.0
        %356 = vmatpush1.msra.mxu0 0.0
        %357 = vmatprep.subr.mxu0 0.0
        %358 = vmatpush1.msra.mxu0 0.0
        %359 = vmatprep.subr.mxu0 0.0
        %360 = vmatpush1.msra.mxu0 0.0
        %361 = vmatprep.subr.mxu0 0.0
        %362 = vmatpush1.msra.mxu0 0.0
        %363 = vmatprep.subr.mxu0 0.0
        %364 = vmatpush1.msra.mxu0 0.0
        %365 = vmatprep.subr.mxu0 0.0
        %366 = vmatpush1.msra.mxu0 0.0
        %367 = vmatprep.subr.mxu0 0.0
        %368 = vmatpush1.msra.mxu0 0.0
        %369 = vmatprep.subr.mxu0 0.0
        %370 = vmatpush1.msra.mxu0 0.0
        %371 = vmatprep.subr.mxu0 0.0
        %372 = vmatpush1.msra.mxu0 0.0
        %373 = vmatprep.subr.mxu0 0.0
        %374 = vmatpush1.msra.mxu0 0.0
        %375 = vmatprep.subr.mxu0 0.0
        %376 = vmatpush1.msra.mxu0 0.0
        %377 = vmatprep.subr.mxu0 0.0
        %378 = vmatpush1.msra.mxu0 0.0
        %379 = vmatprep.subr.mxu0 0.0
        %380 = vmatpush1.msra.mxu0 0.0
        %381 = vmatprep.subr.mxu0 0.0
        %382 = vmatpush1.msra.mxu0 0.0
        %383 = vmatprep.mubr.f32.mxu0 0.0
        %384 = vmatmul.mubr.f32.gmra.mrb[0].mxu0 %v233
        %v385 = vpop.f32.mrb[0].mxu0
        %v386 = vadd.f32 %v230, %v385
        %v387 = vpop.f32.mrb[0].mxu0
        %v388 = vadd.f32 %v230, %v387
        %389 = vdwg.mxu0
        %v390 = vsub.f32 0.0, %v315
        %v391 = vsub.f32 0.0, %v317
        %v392 = vsub.f32 0.0, %v386
        %v393 = vsub.f32 0.0, %v388
        %v394 = vmul.f32 %v390, 1.442695
        %v395 = vpow.pop %v394
        %v396 = vmul.f32 %v391, 1.442695
        %v397 = vpow.pop %v396
        %v398 = vmul.f32 %v392, 1.442695
        %v399 = vpow.pop %v398
        %v400 = vmul.f32 %v393, 1.442695
        %v401 = vpow.pop %v400
        %v402 = vadd.f32 %v395, 1.0
        %v403 = vadd.f32 %v397, 1.0
        %v404 = vadd.f32 %v399, 1.0
        %v405 = vadd.f32 %v401, 1.0
        %v406 = vrcp.pop %v402
        %v407 = vrcp.pop %v403
        %v408 = vrcp.pop %v404
        %v409 = vrcp.pop %v405
        %s410 = sld [smem:[#allocation8]]
        %v411 = vstv %s410
        %v412 = vmul.f32 %v411, %v406
        %v413 = vmul.f32 %v411, %v407
        %v414 = vmul.f32 %v411, %v408
        %v415 = vmul.f32 %v411, %v409
        %v416 = vadd.f32 %v412, 0.0
        %v417 = vadd.f32 %v413, 0.0
        %v418 = vadd.f32 %v414, 0.0
        %v419 = vadd.f32 %v415, 0.0
        %s420 = sld [smem:[#allocation8 + $0x1]]
        %v421 = vstv %s420
        %v422 = vmul.f32 %v421, %v406
        %v423 = vmul.f32 %v421, %v407
        %v424 = vmul.f32 %v421, %v408
        %v425 = vmul.f32 %v421, %v409
        %v430 = vrot.slane %v422, 1
        %v431 = vrot.slane %v423, 1
        %v432 = vrot.slane %v424, 1
        %v433 = vrot.slane %v425, 1
        %v438 = vadd.f32 %v416, %v430
        %v439 = vadd.f32 %v417, %v431
        %v440 = vadd.f32 %v418, %v432
        %v441 = vadd.f32 %v419, %v433
        %s442 = sld [smem:[#allocation8 + $0x2]]
        %v443 = vstv %s442
        %v444 = vmul.f32 %v443, %v406
        %v445 = vmul.f32 %v443, %v407
        %v446 = vmul.f32 %v443, %v408
        %v447 = vmul.f32 %v443, %v409
        %v452 = vrot.slane %v444, 2
        %v453 = vrot.slane %v445, 2
        %v454 = vrot.slane %v446, 2
        %v455 = vrot.slane %v447, 2
        %v460 = vadd.f32 %v438, %v452
        %v461 = vadd.f32 %v439, %v453
        %v462 = vadd.f32 %v440, %v454
        %v463 = vadd.f32 %v441, %v455
        %s464 = sld [smem:[#allocation8 + $0x3]]
        %v465 = vstv %s464
        %v466 = vmul.f32 %v465, %v406
        %v467 = vmul.f32 %v465, %v407
        %v468 = vmul.f32 %v465, %v408
        %v469 = vmul.f32 %v465, %v409
        %v474 = vrot.slane %v466, 3
        %v475 = vrot.slane %v467, 3
        %v476 = vrot.slane %v468, 3
        %v477 = vrot.slane %v469, 3
        %v482 = vadd.f32 %v460, %v474
        %v483 = vadd.f32 %v461, %v475
        %v484 = vadd.f32 %v462, %v476
        %v485 = vadd.f32 %v463, %v477
        %s486 = sld [smem:[#allocation8 + $0x4]]
        %v487 = vstv %s486
        %v488 = vmul.f32 %v487, %v406
        %v489 = vmul.f32 %v487, %v407
        %v490 = vmul.f32 %v487, %v408
        %v491 = vmul.f32 %v487, %v409
        %v496 = vrot.slane %v488, 4
        %v497 = vrot.slane %v489, 4
        %v498 = vrot.slane %v490, 4
        %v499 = vrot.slane %v491, 4
        %v504 = vadd.f32 %v482, %v496
        %v505 = vadd.f32 %v483, %v497
        %v506 = vadd.f32 %v484, %v498
        %v507 = vadd.f32 %v485, %v499
        %s508 = sld [smem:[#allocation8 + $0x5]]
        %v509 = vstv %s508
        %v510 = vmul.f32 %v509, %v406
        %v511 = vmul.f32 %v509, %v407
        %v512 = vmul.f32 %v509, %v408
        %v513 = vmul.f32 %v509, %v409
        %v518 = vrot.slane %v510, 5
        %v519 = vrot.slane %v511, 5
        %v520 = vrot.slane %v512, 5
        %v521 = vrot.slane %v513, 5
        %v526 = vadd.f32 %v504, %v518
        %v527 = vadd.f32 %v505, %v519
        %v528 = vadd.f32 %v506, %v520
        %v529 = vadd.f32 %v507, %v521
        %s530 = sld [smem:[#allocation8 + $0x6]]
        %v531 = vstv %s530
        %v532 = vadd.f32 %v526, %v531
        %v533 = vadd.f32 %v527, %v531
        %v534 = vadd.f32 %v528, %v531
        %v535 = vadd.f32 %v529, %v531
        %v540 = vcombine.low %v532, %v533
        %v541 = vcombine.low %v534, %v535
        %v543 = vunpack.c.l.s4 1966171168
        %v544 = vunpack.c.0.s8 %v543
        %v545 = vlaneseq
        %v546 = vshrl.u32 %v545, 7
        %v547 = vsub.s32 %v544, %v546
        %v548 = vrot.slane %v540, %v547
        %v550 = vunpack.c.l.s4 1966171168
        %v551 = vunpack.c.0.s8 %v550
        %v552 = vlaneseq
        %v553 = vshrl.u32 %v552, 7
        %v554 = vsub.s32 %v551, %v553
        %v555 = vrot.slane %v541, %v554
        %v556 = vcombine.low %v548, %v555
        %v558 = vunpack.c.l.s4 1966171168
        %v559 = vunpack.c.0.s8 %v558
        %v560 = vlaneseq
        %v561 = vshrl.u32 %v560, 7
        %v562 = vsub.s32 %v559, %v561
        %v563 = vrot.slane %v556, %v562
        %v565 = vlaneseq
        %vm566 = vcmp.ge.s32.totalorder %v565, 0
        %vm567 = vcmp.lt.s32.totalorder %v565, 512
        %vm568 = vmand %vm566, %vm567
        %569 = vst.msk [vmem:[%s215] sm:$0xf] %vm568, %v563
        %s570 = sand.u32 %s98, 1
        %s571 = scalar_lea.sflag [#allocation4], %s570
        %s572 = sand.u32 %s98, 1
        %s573 = smul.addr %s572, 4
        %s574 = scalar_lea.vmem [#allocation9], %s573
        // Predicated region
        $region45: #{tpu_custom_call.1} parent=31 // pred_check
          %p575 = pneg %p108
        $region46: #{tpu_custom_call.1} parent=31 // pred_check_branch
          %577 = sbr.rel (%p575) target = $region48
        $region47: #{tpu_custom_call.1} parent=31 // pred_region
          %s578 = smul.u32 4, %s22
          %s580 = ssub.s32 64, 64
          %581 = vsyncadd %s571, %s580
          %s582 = smul.addr %s578, 16
          %s583 = scalar_lea.hbm %s3, %s582
          %s585 = sshll.u32 %s574, 4
          %s586 = int_to_ptr.vmem [resolvable:$true] %s585
          %588 = dma.vmem_to_hbm [thread:$0]  %s586, 64, %s583, %s571
        $region48: #{tpu_custom_call.1} parent=31 // pred_fallthru
          _
      $region32: #{tpu_custom_call.1} parent=5 // pred_fallthru
        _
      %p589 = scmp.le.s32.totalorder 2, %s17
      // Predicated region
      $region49: #{tpu_custom_call.1} parent=5 // pred_check
        %p590 = pneg %p589
      $region50: #{tpu_custom_call.1} parent=5 // pred_check_branch
        %592 = sbr.rel (%p590) target = $region52
      $region51: #{tpu_custom_call.1} parent=5 // pred_region
        %s593 = ssub.s32 %s17, 2
        // Predicated region
        $region53: #{tpu_custom_call.1} parent=51 // pred_check
          %p594 = pneg %p114
        $region54: #{tpu_custom_call.1} parent=51 // pred_check_branch
          %596 = sbr.rel (%p594) target = $region56
        $region55: #{tpu_custom_call.1} parent=51 // pred_region
          %s597 = sand.u32 %s99, 1
          %s598 = scalar_lea.sflag [#allocation4], %s597
          %s599 = sand.u32 %s99, 1
          %s600 = smul.addr %s599, 4
          %s601 = scalar_lea.vmem [#allocation9], %s600
          %602 = dma.done %s598, 64
        $region56: #{tpu_custom_call.1} parent=51 // pred_fallthru
          _
      $region52: #{tpu_custom_call.1} parent=5 // pred_fallthru
        _
    $region6: #{tpu_custom_call.1} parent=1 // loop_footer
      %s21 = sadd.s32 1, %s17
    $region7: #{tpu_custom_call.1} parent=1 // loop_footer_branch
      %16 = sbr.rel target = $region3
    $region8: #{tpu_custom_call.1} parent=1 // loop_exit
      _
    %603 = vsyncpa [#allocation3], 1
    %s604 = scalar_lea.sflag [#allocation3], 1
    %605 = vsyncpa %s604, 1
    %606 = vsyncpa [#allocation7], 1
    %607 = vsyncpa [#allocation4], 1
    %s608 = scalar_lea.sflag [#allocation4], 1
    %609 = vsyncpa %s608, 1
    %610 = vsyncpa [#allocation5], 1
    %s611 = scalar_lea.sflag [#allocation5], 1
    %612 = vsyncpa %s611, 1

</llo_original>
